<compile_context>
chip_gen: v7x
topology: tpu7x:2x2x1
jax: 0.10.0
libtpu: 0.0.40
codegen_flags: <defaults>
</compile_context>

<pallas_src>
import functools

import jax
import jax.numpy as jnp
import numpy as np
from jax.experimental import pallas as pl
from jax.experimental.pallas import tpu as pltpu


def _round_up(x, m):
    return (x + m - 1) // m * m


def _mlp_kernel(n_layers, compute_dtype, x_ref, *refs):
    """Fused value-net MLP forward for one batch tile.

    refs = (w0_ref, b0_ref, ..., w{L-1}_ref, b{L-1}_ref, out_ref).
    Hidden-layer weights arrive pre-cast to `compute_dtype` (bf16 -> MXU);
    accumulation, bias add and ReLU stay in f32 on the VPU.  The d_out==1 head
    weight arrives as a (1, H) f32 row vector and is applied as a VPU multiply
    + XLU lane reduce, producing an exact (tile_b, 1) result (no MXU padding,
    no 128-lane output padding).
    """
    out_ref = refs[-1]
    params = refs[:-1]

    h = x_ref[...].astype(compute_dtype)                  # (tile_b, d_in)
    for layer in range(n_layers - 1):                     # hidden layers -> MXU
        w = params[2 * layer][...]                        # (fan_in, H) compute_dtype
        b = params[2 * layer + 1][...]                    # (1, H) f32, broadcasts
        h = jnp.dot(h, w, preferred_element_type=jnp.float32) + b
        h = jnp.maximum(h, 0.0).astype(compute_dtype)

    w_last = params[-2][...]
    b_last = params[-1][...]                              # (1, d_out) f32
    if b_last.shape[-1] == 1:
        # d_out == 1: (tile_b, H) * (1, H) -> lane reduce -> (tile_b, 1).
        out = jnp.sum(h.astype(jnp.float32) * w_last, axis=-1, keepdims=True) + b_last
    else:
        out = jnp.dot(h, w_last.astype(h.dtype),
                      preferred_element_type=jnp.float32) + b_last
    out_ref[...] = out.astype(out_ref.dtype)


def prepare_value_net_params(weights, biases, compute_dtype=jnp.bfloat16):
    """One-time parameter preprocessing (hoisted out of the per-call path).

    weights[i]: (fan_in_i, fan_out_i) f32 (torch Linear weight, pre-transposed)
    biases[i]:  (fan_out_i,) f32

    Hidden-layer weights are cast to `compute_dtype` (MXU-native, half the
    HBM/VMEM bytes).  The tiny d_out==1 head weight is kept in f32 and stored
    transposed as (1, H) so the kernel's lane reduce needs no in-kernel
    transpose.  Biases become (1, fan_out) f32 rows.
    """
    n = len(weights)
    prep_w, prep_b = [], []
    for i, (w, b) in enumerate(zip(weights, biases)):
        w = jnp.asarray(w, jnp.float32)
        b = jnp.asarray(b, jnp.float32).reshape(1, -1)
        if i < n - 1:
            prep_w.append(w.astype(compute_dtype))
        elif w.shape[1] == 1:
            prep_w.append(w.T)                      # (1, H) f32 head row vector
        else:
            prep_w.append(w.astype(compute_dtype))
        prep_b.append(b)
    return prep_w, prep_b


def value_function_forward(emb, prep_weights, prep_biases, *, max_tile_b=2048):
    """Run the value-net MLP on already-embedded observations.

    emb: (batch, d_latent), f32 or bf16 (bf16 halves the input HBM stream)
    prep_weights / prep_biases: output of prepare_value_net_params
    returns: (batch, 1) f32
    """
    n_layers = len(prep_weights)
    B, d_in = emb.shape
    d_out = prep_biases[-1].shape[-1]
    compute_dtype = prep_weights[0].dtype if n_layers > 1 else jnp.float32

    # --- batch tiling ---------------------------------------------------
    # Big tiles amortize the ~0.35us per-grid-step overhead, but large batches
    # are always split into >= 2 tiles so both v7x TensorCores get work (the
    # extra grid step is negligible on single-TC v5e/v6e).  tile_b is a
    # multiple of 8 sublanes; the ragged trailing block is handled by Pallas
    # (no wrapper-side jnp.pad, no post-slice).
    tile_b = _round_up(min(int(max_tile_b), max(8, pl.cdiv(B, 2))), 8)
    grid = (pl.cdiv(B, tile_b),)

    args = [emb]
    in_specs = [pl.BlockSpec((tile_b, d_in), lambda i: (i, 0))]
    for w, b in zip(prep_weights, prep_biases):
        args += [w, b]
        # Constant index_map: weight/bias blocks are invariant across the batch
        # grid, so they are DMA'd once and stay VMEM-resident across tiles.
        in_specs += [pl.BlockSpec(w.shape, lambda i: (0, 0)),
                     pl.BlockSpec(b.shape, lambda i: (0, 0))]

    # --- scoped-VMEM limit: only raise when the footprint is actually large;
    #     cap generation-aware at <= 50% of physical VMEM (v7x has 64 MiB). ---
    weight_bytes = sum(int(np.prod(w.shape)) * w.dtype.itemsize for w in prep_weights)
    bias_bytes = sum(int(np.prod(b.shape)) * b.dtype.itemsize for b in prep_biases)
    max_feat = max([d_in, d_out] + [w.shape[-1] for w in prep_weights])
    act_bytes = 2 * tile_b * max_feat * 4
    io_bytes = 2 * tile_b * d_in * emb.dtype.itemsize + 2 * tile_b * d_out * 4
    est = weight_bytes + bias_bytes + act_bytes + io_bytes
    vmem_limit = None
    if est > 12 * 1024 * 1024:
        try:
            phys = int(pltpu.get_tpu_info().vmem_capacity_bytes)
        except Exception:
            phys = 64 * 1024 * 1024            # conservative: v7x per-TC VMEM
        vmem_limit = int(min(max(2 * est, 32 * 1024 * 1024), phys // 2))

    kernel = functools.partial(_mlp_kernel, n_layers, compute_dtype)
    out = pl.pallas_call(
        kernel,
        out_shape=jax.ShapeDtypeStruct((B, d_out), jnp.float32),
        grid=grid,
        in_specs=in_specs,
        out_specs=pl.BlockSpec((tile_b, d_out), lambda i: (i, 0)),
        compiler_params=pltpu.CompilerParams(
            dimension_semantics=("parallel",),   # megacore sharding on v7x
            vmem_limit_bytes=vmem_limit),
    )(*args)
    return out


def init_generic_net(key, d_in, d_out, n_hidden, hidden_size):
    """Deterministic init mimicking torch.nn.Linear defaults (U(-1/sqrt(fan_in), ...)).

    Weights are stored pre-transposed as (fan_in, fan_out).
    """
    dims = [d_in] + [hidden_size] * n_hidden + [d_out]
    weights, biases = [], []
    for fan_in, fan_out in zip(dims[:-1], dims[1:]):
        key, kw, kb = jax.random.split(key, 3)
        bound = 1.0 / float(np.sqrt(fan_in))
        weights.append(
            jax.random.uniform(kw, (fan_in, fan_out), jnp.float32, -bound, bound))
        biases.append(
            jax.random.uniform(kb, (fan_out,), jnp.float32, -bound, bound))
    return weights, biases


def reference_forward_f32(emb, weights, biases):
    """Pure-f32 reference matching the PyTorch ValueFunction math."""
    h = emb.astype(jnp.float32)
    n = len(weights)
    for i, (w, b) in enumerate(zip(weights, biases)):
        h = jnp.dot(h, w) + b
        if i != n - 1:
            h = jnp.maximum(h, 0.0)
    return h


def reference_forward_mixed(emb, prep_weights, prep_biases):
    """Plain-JAX reference using the kernel's exact bf16/f32 recipe."""
    n = len(prep_weights)
    cdt = prep_weights[0].dtype if n > 1 else jnp.float32
    h = emb.astype(cdt)
    for i in range(n - 1):
        h = jnp.dot(h, prep_weights[i], preferred_element_type=jnp.float32) + prep_biases[i]
        h = jnp.maximum(h, 0.0).astype(cdt)
    w_last, b_last = prep_weights[-1], prep_biases[-1]
    if b_last.shape[-1] == 1:
        out = jnp.sum(h.astype(jnp.float32) * w_last, axis=-1, keepdims=True) + b_last
    else:
        out = jnp.dot(h, w_last.astype(h.dtype),
                      preferred_element_type=jnp.float32) + b_last
    return out


if __name__ == "__main__":
    # Small config consistent with the module: cfg.d_latent, cfg.val_n_hidden,
    # cfg.val_hidden_size; the value net's output dim is 1.  batch=10 is
    # deliberately ragged (not a multiple of 8) to exercise the masked edge tile.
    batch = 10
    d_latent = 32
    n_hidden = 2
    hidden_size = 32

    key = jax.random.PRNGKey(0)
    key, k_emb, k_net = jax.random.split(key, 3)

    # already_embedded=True path: obs are latent embeddings (batch, d_latent).
    emb = jax.random.normal(k_emb, (batch, d_latent), dtype=jnp.float32)
    weights, biases = init_generic_net(k_net, d_latent, 1, n_hidden, hidden_size)
    prep_w, prep_b = prepare_value_net_params(weights, biases)

    ref_f32 = reference_forward_f32(emb, weights, biases)
    ref_mix = reference_forward_mixed(emb, prep_w, prep_b)

    # Default tiling (tile_b=8 here -> grid=(2,), exercising the ragged block).
    val = jax.block_until_ready(value_function_forward(emb, prep_w, prep_b))
    assert val.shape == (batch, 1), val.shape
    np.testing.assert_allclose(np.asarray(val), np.asarray(ref_mix),
                               rtol=1e-4, atol=1e-4)
    np.testing.assert_allclose(np.asarray(val), np.asarray(ref_f32),
                               rtol=2e-2, atol=2e-2)

    # bf16 embeddings from the caller: halves the input HBM stream.
    val_bf16 = jax.block_until_ready(
        value_function_forward(emb.astype(jnp.bfloat16), prep_w, prep_b))
    np.testing.assert_allclose(np.asarray(val_bf16), np.asarray(ref_f32),
                               rtol=2e-2, atol=2e-2)

    # Multi-tile, evenly-dividing batch.
    key, k_emb2 = jax.random.split(key)
    emb2 = jax.random.normal(k_emb2, (64, d_latent), dtype=jnp.float32)
    ref2 = reference_forward_f32(emb2, weights, biases)
    val2 = jax.block_until_ready(
        value_function_forward(emb2, prep_w, prep_b, max_tile_b=32))
    assert val2.shape == (64, 1), val2.shape
    np.testing.assert_allclose(np.asarray(val2), np.asarray(ref2),
                               rtol=2e-2, atol=2e-2)

    print("KERNEL_OK")
</pallas_src>

<mosaic_0001>
module attributes {stable_mosaic.version = 11 : i64} {
  func.func @_mlp_kernel(%arg0: i32, %arg1: memref<8x32xf32, #tpu.memory_space<vmem>>, %arg2: memref<32x32xbf16, #tpu.memory_space<vmem>>, %arg3: memref<1x32xf32, #tpu.memory_space<vmem>>, %arg4: memref<32x32xbf16, #tpu.memory_space<vmem>>, %arg5: memref<1x32xf32, #tpu.memory_space<vmem>>, %arg6: memref<1x32xf32, #tpu.memory_space<vmem>>, %arg7: memref<1x1xf32, #tpu.memory_space<vmem>>, %arg8: memref<8x1xf32, #tpu.memory_space<vmem>>) attributes {dimension_semantics = [#tpu.dimension_semantics<parallel>], iteration_bounds = array<i64: 2>, scalar_prefetch = 0 : i64, scratch_operands = 0 : i64, tpu.core_type = #tpu.core_type<tc>, window_params = [{transform_indices = @transform_0, window_bounds = array<i64: 8, 32>}, {pipeline_mode = #tpu.pipeline_mode<synchronous>, transform_indices = @transform_1, window_bounds = array<i64: 32, 32>}, {pipeline_mode = #tpu.pipeline_mode<synchronous>, transform_indices = @transform_2, window_bounds = array<i64: 1, 32>}, {pipeline_mode = #tpu.pipeline_mode<synchronous>, transform_indices = @transform_3, window_bounds = array<i64: 32, 32>}, {pipeline_mode = #tpu.pipeline_mode<synchronous>, transform_indices = @transform_4, window_bounds = array<i64: 1, 32>}, {pipeline_mode = #tpu.pipeline_mode<synchronous>, transform_indices = @transform_5, window_bounds = array<i64: 1, 32>}, {pipeline_mode = #tpu.pipeline_mode<synchronous>, transform_indices = @transform_6, window_bounds = array<i64: 1, 1>}, {transform_indices = @transform_7, window_bounds = array<i64: 8, 1>}]} {
    %c0 = arith.constant 0 : index
    %c0_0 = arith.constant 0 : index
    %0 = vector.load %arg1[%c0, %c0_0] : memref<8x32xf32, #tpu.memory_space<vmem>>, vector<8x32xf32>
    %1 = arith.truncf %0 : vector<8x32xf32> to vector<8x32xbf16>
    %c0_1 = arith.constant 0 : index
    %c0_2 = arith.constant 0 : index
    %2 = vector.load %arg2[%c0_1, %c0_2] : memref<32x32xbf16, #tpu.memory_space<vmem>>, vector<32x32xbf16>
    %c0_3 = arith.constant 0 : index
    %c0_4 = arith.constant 0 : index
    %3 = vector.load %arg3[%c0_3, %c0_4] : memref<1x32xf32, #tpu.memory_space<vmem>>, vector<1x32xf32>
    %cst = arith.constant dense<0.000000e+00> : vector<8x32xf32>
    %4 = tpu.matmul %1, %2, %cst {dimension_numbers = #tpu.dot_dimension_numbers<[1], [0], [0], [1], [0, 0, 1, 1], [], []>} : vector<8x32xbf16>, vector<32x32xbf16>, vector<8x32xf32> -> vector<8x32xf32>
    %5 = vector.broadcast %3 : vector<1x32xf32> to vector<8x32xf32>
    %6 = arith.addf %4, %5 : vector<8x32xf32>
    %cst_5 = arith.constant 0.000000e+00 : f32
    %7 = vector.broadcast %cst_5 : f32 to vector<8x32xf32>
    %8 = arith.maximumf %6, %7 : vector<8x32xf32>
    %9 = arith.truncf %8 : vector<8x32xf32> to vector<8x32xbf16>
    %c0_6 = arith.constant 0 : index
    %c0_7 = arith.constant 0 : index
    %10 = vector.load %arg4[%c0_6, %c0_7] : memref<32x32xbf16, #tpu.memory_space<vmem>>, vector<32x32xbf16>
    %c0_8 = arith.constant 0 : index
    %c0_9 = arith.constant 0 : index
    %11 = vector.load %arg5[%c0_8, %c0_9] : memref<1x32xf32, #tpu.memory_space<vmem>>, vector<1x32xf32>
    %cst_10 = arith.constant dense<0.000000e+00> : vector<8x32xf32>
    %12 = tpu.matmul %9, %10, %cst_10 {dimension_numbers = #tpu.dot_dimension_numbers<[1], [0], [0], [1], [0, 0, 1, 1], [], []>} : vector<8x32xbf16>, vector<32x32xbf16>, vector<8x32xf32> -> vector<8x32xf32>
    %13 = vector.broadcast %11 : vector<1x32xf32> to vector<8x32xf32>
    %14 = arith.addf %12, %13 : vector<8x32xf32>
    %cst_11 = arith.constant 0.000000e+00 : f32
    %15 = vector.broadcast %cst_11 : f32 to vector<8x32xf32>
    %16 = arith.maximumf %14, %15 : vector<8x32xf32>
    %17 = arith.truncf %16 : vector<8x32xf32> to vector<8x32xbf16>
    %c0_12 = arith.constant 0 : index
    %c0_13 = arith.constant 0 : index
    %18 = vector.load %arg6[%c0_12, %c0_13] : memref<1x32xf32, #tpu.memory_space<vmem>>, vector<1x32xf32>
    %c0_14 = arith.constant 0 : index
    %c0_15 = arith.constant 0 : index
    %19 = vector.load %arg7[%c0_14, %c0_15] : memref<1x1xf32, #tpu.memory_space<vmem>>, vector<1x1xf32>
    %20 = arith.extf %17 : vector<8x32xbf16> to vector<8x32xf32>
    %21 = vector.broadcast %18 : vector<1x32xf32> to vector<8x32xf32>
    %22 = arith.mulf %20, %21 : vector<8x32xf32>
    %cst_16 = arith.constant dense<0.000000e+00> : vector<8xf32>
    %23 = vector.multi_reduction <add>, %22, %cst_16 [1] : vector<8x32xf32> to vector<8xf32>
    %24 = vector.shape_cast %23 : vector<8xf32> to vector<8x1xf32>
    %25 = vector.broadcast %19 : vector<1x1xf32> to vector<8x1xf32>
    %26 = arith.addf %24, %25 : vector<8x1xf32>
    %c0_17 = arith.constant 0 : index
    %c0_18 = arith.constant 0 : index
    %27 = vector.load %arg8[%c0_17, %c0_18] : memref<8x1xf32, #tpu.memory_space<vmem>>, vector<8x1xf32>
    tpu.vector_store %arg8[%c0_17, %c0_18], %26 {strides = array<i32>} : memref<8x1xf32, #tpu.memory_space<vmem>>, vector<8x1xf32>,
    return
  }
  func.func @transform_0(%arg0: i32) -> (i32, i32) {
    %c0_i32 = arith.constant 0 : i32
    %c0_i32_0 = arith.constant 0 : i32
    return %arg0, %c0_i32 : i32, i32
  }
  func.func @transform_1(%arg0: i32) -> (i32, i32) {
    %c0_i32 = arith.constant 0 : i32
    %c0_i32_0 = arith.constant 0 : i32
    %c0_i32_1 = arith.constant 0 : i32
    return %c0_i32, %c0_i32_0 : i32, i32
  }
  func.func @transform_2(%arg0: i32) -> (i32, i32) {
    %c0_i32 = arith.constant 0 : i32
    %c0_i32_0 = arith.constant 0 : i32
    %c0_i32_1 = arith.constant 0 : i32
    return %c0_i32, %c0_i32_0 : i32, i32
  }
  func.func @transform_3(%arg0: i32) -> (i32, i32) {
    %c0_i32 = arith.constant 0 : i32
    %c0_i32_0 = arith.constant 0 : i32
    %c0_i32_1 = arith.constant 0 : i32
    return %c0_i32, %c0_i32_0 : i32, i32
  }
  func.func @transform_4(%arg0: i32) -> (i32, i32) {
    %c0_i32 = arith.constant 0 : i32
    %c0_i32_0 = arith.constant 0 : i32
    %c0_i32_1 = arith.constant 0 : i32
    return %c0_i32, %c0_i32_0 : i32, i32
  }
  func.func @transform_5(%arg0: i32) -> (i32, i32) {
    %c0_i32 = arith.constant 0 : i32
    %c0_i32_0 = arith.constant 0 : i32
    %c0_i32_1 = arith.constant 0 : i32
    return %c0_i32, %c0_i32_0 : i32, i32
  }
  func.func @transform_6(%arg0: i32) -> (i32, i32) {
    %c0_i32 = arith.constant 0 : i32
    %c0_i32_0 = arith.constant 0 : i32
    %c0_i32_1 = arith.constant 0 : i32
    return %c0_i32, %c0_i32_0 : i32, i32
  }
  func.func @transform_7(%arg0: i32) -> (i32, i32) {
    %c0_i32 = arith.constant 0 : i32
    %c0_i32_0 = arith.constant 0 : i32
    return %arg0, %c0_i32 : i32, i32
  }
}

</mosaic_0001>

<llo_original>
// kernel: tpu_custom_call.1
$region0: #{tpu_custom_call.1}
  #allocation0 [shape = 'u32[]', space=smem, size = 0x4, offset = 0x4, fixed_abs, tag = 'smem constant byte address 0x4 - core index']
  #allocation1 [shape = 'u32[144,128]{1,0:T(1,128)}', space=vmem, size = 0x12000, scoped, tag = 'internal scratch']
  #allocation2 [shape = 'f32[1,1]{1,0:T(1,128)S(1)}', space=vmem, size = 0x200, scoped, tag = 'scoped memory for tpu_custom_call.1']
  %s0 = inlined_call_operand.hbm [shape: f32[10,32], index: 0, kind: input, shape index: {}]
  %s1 = inlined_call_operand.hbm [shape: bf16[32,32], index: 1, kind: input, shape index: {}]
  %s2 = inlined_call_operand.vmem [shape: f32[1,32], index: 2, kind: input, shape index: {}]
  %s3 = inlined_call_operand.hbm [shape: bf16[32,32], index: 3, kind: input, shape index: {}]
  %s4 = inlined_call_operand.vmem [shape: f32[1,32], index: 4, kind: input, shape index: {}]
  %s5 = inlined_call_operand.vmem [shape: f32[1,32], index: 5, kind: input, shape index: {}]
  %s6 = inlined_call_operand.<no memory space> [shape: f32[1,1], index: 6, kind: input, shape index: {}]
  %s7 = inlined_call_operand.vmem [shape: f32[10,1], index: 7, kind: output, shape index: {}]
  %s8 = sld [smem:[#allocation0]]
  $region73: #{tpu_custom_call.1} parent=0
    _
  %s10 = ssub.s32 1, %s8
  %s11 = scalar_select 0, %s10, %s8
  %v12 = vstv %s6
  %13 = vst [vmem:[#allocation2] sm:$0x1] %v12
  $region1: #{tpu_custom_call.1} parent=0
    #allocation3 [shape = 'u8[8192]{0}', space=vmem, size = 0x2000, scoped, tag = 'input window, operand 0']
    #allocation4 [shape = 's32[2]{0}', space=sflag, size = 0x8, scoped, tag = 'scoped memory for tpu_custom_call.1']
    #allocation5 [shape = 'u8[8192]{0}', space=vmem, size = 0x2000, scoped, tag = 'input window, operand 1, single buffered']
    #allocation6 [shape = 's32[1]{0}', space=sflag, size = 0x4, scoped, tag = 'scoped memory for tpu_custom_call.1']
    #allocation7 [shape = 'u8[8192]{0}', space=vmem, size = 0x2000, scoped, tag = 'input window, operand 3, single buffered']
    %14 = vsyncpa [#allocation4], 0
    %s15 = scalar_lea.sflag [#allocation4], 1
    %16 = vsyncpa %s15, 0
    %17 = vsyncpa [#allocation6], 0
    loop: start=0, step=1, limit=4
    $region2: #{tpu_custom_call.1} parent=1 // loop_pre_header
      _
    $region3: #{tpu_custom_call.1} parent=1 // loop_header
      %s19 = sphi 0, %s23
      %p20 = scmp.ge.s32.totalorder %s19, 4
      %s29 = sphi 0, %s31
      %s32 = sphi 0, %s29
      %s33 = sphi 0, %s32
      %s49 = sphi 0, %s33
      %s53 = sphi 0, %s53
      %s55 = sphi 0, %s53
      %s56 = sphi 0, %s55
      %s70 = sphi 0, %s56
      %s74 = sphi 0, %s74
      %s76 = sphi 0, %s74
      %s77 = sphi 0, %s76
      %s91 = sphi 0, %s77
      %s95 = sphi 0, %s95
      %s97 = sphi 0, %s95
      %s98 = sphi 0, %s97
      %s112 = sphi 0, %s98
      %s116 = sphi 0, %s116
      %s118 = sphi 0, %s116
      %s119 = sphi 0, %s118
      %s133 = sphi 0, %s119
      %s137 = sphi 0, %s137
      %s139 = sphi 0, %s137
      %s140 = sphi 0, %s139
      %s154 = sphi 0, %s140
      %s158 = sphi 0, %s158
      %s160 = sphi 0, %s158
      %s161 = sphi 0, %s160
      %s175 = sphi 0, %s161
      %s181 = sphi 0, %s183
      %s184 = sphi 0, %s181
      %s185 = sphi 0, %s184
      %s201 = sphi 0, %s185
    $region4: #{tpu_custom_call.1} parent=1 // loop_header_branch
      %22 = sbr.rel (%p20) target = $region8
    $region5: #{tpu_custom_call.1} parent=1 // loop_body
      %s24 = ssub.s32 %s19, 1
      %s25 = ssub.s32 %s19, 2
      %s26 = sadd.s32 %s19, 1
      %s27 = ssub.s32 %s19, %s26
      %p28 = scmp.eq.s32.totalorder %s27, 0
      %s30 = sadd.s32 %s29, 1
      %s31 = scalar_select %p28, %s29, %s30
      %p34 = pneg %p28
      %p35 = scmp.eq.s32.totalorder %s19, 1
      %p36 = por %p34, %p35
      %p37 = scmp.ne.s32.totalorder %s29, %s32
      %p38 = scmp.eq.s32.totalorder %s19, 0
      %p39 = por %p37, %p38
      %p40 = scmp.ne.s32.totalorder %s29, %s32
      %p41 = scmp.eq.s32.totalorder %s24, 1
      %p42 = por %p40, %p41
      %p43 = scmp.ne.s32.totalorder %s32, %s33
      %p44 = scmp.eq.s32.totalorder %s24, 0
      %p45 = por %p43, %p44
      %p46 = scmp.ne.s32.totalorder %s32, %s33
      %p47 = scmp.eq.s32.totalorder %s25, 1
      %p48 = por %p46, %p47
      %p50 = scmp.ne.s32.totalorder %s33, %s49
      %p51 = scmp.eq.s32.totalorder %s25, 0
      %p52 = por %p50, %p51
      %s54 = sadd.s32 %s53, 1
      %p57 = scmp.eq.s32.totalorder %s19, 1
      %p58 = scmp.ne.s32.totalorder %s53, %s55
      %p59 = scmp.eq.s32.totalorder %s19, 0
      %p60 = por %p58, %p59
      %p61 = scmp.ne.s32.totalorder %s53, %s55
      %p62 = scmp.eq.s32.totalorder %s24, 1
      %p63 = por %p61, %p62
      %p64 = scmp.ne.s32.totalorder %s55, %s56
      %p65 = scmp.eq.s32.totalorder %s24, 0
      %p66 = por %p64, %p65
      %p67 = scmp.ne.s32.totalorder %s55, %s56
      %p68 = scmp.eq.s32.totalorder %s25, 1
      %p69 = por %p67, %p68
      %p71 = scmp.ne.s32.totalorder %s56, %s70
      %p72 = scmp.eq.s32.totalorder %s25, 0
      %p73 = por %p71, %p72
      %s75 = sadd.s32 %s74, 1
      %p78 = scmp.eq.s32.totalorder %s19, 1
      %p79 = scmp.ne.s32.totalorder %s74, %s76
      %p80 = scmp.eq.s32.totalorder %s19, 0
      %p81 = por %p79, %p80
      %p82 = scmp.ne.s32.totalorder %s74, %s76
      %p83 = scmp.eq.s32.totalorder %s24, 1
      %p84 = por %p82, %p83
      %p85 = scmp.ne.s32.totalorder %s76, %s77
      %p86 = scmp.eq.s32.totalorder %s24, 0
      %p87 = por %p85, %p86
      %p88 = scmp.ne.s32.totalorder %s76, %s77
      %p89 = scmp.eq.s32.totalorder %s25, 1
      %p90 = por %p88, %p89
      %p92 = scmp.ne.s32.totalorder %s77, %s91
      %p93 = scmp.eq.s32.totalorder %s25, 0
      %p94 = por %p92, %p93
      %s96 = sadd.s32 %s95, 1
      %p99 = scmp.eq.s32.totalorder %s19, 1
      %p100 = scmp.ne.s32.totalorder %s95, %s97
      %p101 = scmp.eq.s32.totalorder %s19, 0
      %p102 = por %p100, %p101
      %p103 = scmp.ne.s32.totalorder %s95, %s97
      %p104 = scmp.eq.s32.totalorder %s24, 1
      %p105 = por %p103, %p104
      %p106 = scmp.ne.s32.totalorder %s97, %s98
      %p107 = scmp.eq.s32.totalorder %s24, 0
      %p108 = por %p106, %p107
      %p109 = scmp.ne.s32.totalorder %s97, %s98
      %p110 = scmp.eq.s32.totalorder %s25, 1
      %p111 = por %p109, %p110
      %p113 = scmp.ne.s32.totalorder %s98, %s112
      %p114 = scmp.eq.s32.totalorder %s25, 0
      %p115 = por %p113, %p114
      %s117 = sadd.s32 %s116, 1
      %p120 = scmp.eq.s32.totalorder %s19, 1
      %p121 = scmp.ne.s32.totalorder %s116, %s118
      %p122 = scmp.eq.s32.totalorder %s19, 0
      %p123 = por %p121, %p122
      %p124 = scmp.ne.s32.totalorder %s116, %s118
      %p125 = scmp.eq.s32.totalorder %s24, 1
      %p126 = por %p124, %p125
      %p127 = scmp.ne.s32.totalorder %s118, %s119
      %p128 = scmp.eq.s32.totalorder %s24, 0
      %p129 = por %p127, %p128
      %p130 = scmp.ne.s32.totalorder %s118, %s119
      %p131 = scmp.eq.s32.totalorder %s25, 1
      %p132 = por %p130, %p131
      %p134 = scmp.ne.s32.totalorder %s119, %s133
      %p135 = scmp.eq.s32.totalorder %s25, 0
      %p136 = por %p134, %p135
      %s138 = sadd.s32 %s137, 1
      %p141 = scmp.eq.s32.totalorder %s19, 1
      %p142 = scmp.ne.s32.totalorder %s137, %s139
      %p143 = scmp.eq.s32.totalorder %s19, 0
      %p144 = por %p142, %p143
      %p145 = scmp.ne.s32.totalorder %s137, %s139
      %p146 = scmp.eq.s32.totalorder %s24, 1
      %p147 = por %p145, %p146
      %p148 = scmp.ne.s32.totalorder %s139, %s140
      %p149 = scmp.eq.s32.totalorder %s24, 0
      %p150 = por %p148, %p149
      %p151 = scmp.ne.s32.totalorder %s139, %s140
      %p152 = scmp.eq.s32.totalorder %s25, 1
      %p153 = por %p151, %p152
      %p155 = scmp.ne.s32.totalorder %s140, %s154
      %p156 = scmp.eq.s32.totalorder %s25, 0
      %p157 = por %p155, %p156
      %s159 = sadd.s32 %s158, 1
      %p162 = scmp.eq.s32.totalorder %s19, 1
      %p163 = scmp.ne.s32.totalorder %s158, %s160
      %p164 = scmp.eq.s32.totalorder %s19, 0
      %p165 = por %p163, %p164
      %p166 = scmp.ne.s32.totalorder %s158, %s160
      %p167 = scmp.eq.s32.totalorder %s24, 1
      %p168 = por %p166, %p167
      %p169 = scmp.ne.s32.totalorder %s160, %s161
      %p170 = scmp.eq.s32.totalorder %s24, 0
      %p171 = por %p169, %p170
      %p172 = scmp.ne.s32.totalorder %s160, %s161
      %p173 = scmp.eq.s32.totalorder %s25, 1
      %p174 = por %p172, %p173
      %p176 = scmp.ne.s32.totalorder %s161, %s175
      %p177 = scmp.eq.s32.totalorder %s25, 0
      %p178 = por %p176, %p177
      %s179 = ssub.s32 %s19, %s26
      %p180 = scmp.eq.s32.totalorder %s179, 0
      %s182 = sadd.s32 %s181, 1
      %s183 = scalar_select %p180, %s181, %s182
      %p186 = pneg %p180
      %p187 = scmp.eq.s32.totalorder %s19, 1
      %p188 = por %p186, %p187
      %p189 = scmp.ne.s32.totalorder %s181, %s184
      %p190 = scmp.eq.s32.totalorder %s19, 0
      %p191 = por %p189, %p190
      %p192 = scmp.ne.s32.totalorder %s181, %s184
      %p193 = scmp.eq.s32.totalorder %s24, 1
      %p194 = por %p192, %p193
      %p195 = scmp.ne.s32.totalorder %s184, %s185
      %p196 = scmp.eq.s32.totalorder %s24, 0
      %p197 = por %p195, %p196
      %p198 = scmp.ne.s32.totalorder %s184, %s185
      %p199 = scmp.eq.s32.totalorder %s25, 1
      %p200 = por %p198, %p199
      %p202 = scmp.ne.s32.totalorder %s185, %s201
      %p203 = scmp.eq.s32.totalorder %s25, 0
      %p204 = por %p202, %p203
      %p205 = scmp.le.s32.totalorder 1, %s19
      %p206 = scmp.lt.s32.totalorder %s19, 3
      %p207 = pnand %p205, %p206
      %p208 = pneg %p207
      // Predicated region
      $region9: #{tpu_custom_call.1} parent=5 // pred_check
        _
      $region10: #{tpu_custom_call.1} parent=5 // pred_check_branch
        %210 = sbr.rel (%p207) target = $region12
      $region11: #{tpu_custom_call.1} parent=5 // pred_region
        %s211 = ssub.s32 %s19, 1
        // Predicated region
        $region13: #{tpu_custom_call.1} parent=11 // pred_check
          %p212 = pneg %p66
        $region14: #{tpu_custom_call.1} parent=11 // pred_check_branch
          %214 = sbr.rel (%p212) target = $region16
        $region15: #{tpu_custom_call.1} parent=11 // pred_region
          %s216 = ssub.s32 256, 256
          %217 = vsyncadd [#allocation6], %s216
          %s218 = sshll.u32 [#allocation5], 4
          %s219 = int_to_ptr.vmem [resolvable:$true] %s218
          %224 = dma.hbm_to_vmem [thread:$0]  %s1, 256, %s219, [#allocation6], 64, 64, 4
        $region16: #{tpu_custom_call.1} parent=11 // pred_fallthru
          _
        // Predicated region
        $region17: #{tpu_custom_call.1} parent=11 // pred_check
          %p225 = pneg %p87
        $region18: #{tpu_custom_call.1} parent=11 // pred_check_branch
          %227 = sbr.rel (%p225) target = $region20
        $region19: #{tpu_custom_call.1} parent=11 // pred_region
          _
        $region20: #{tpu_custom_call.1} parent=11 // pred_fallthru
          _
        // Predicated region
        $region21: #{tpu_custom_call.1} parent=11 // pred_check
          %p228 = pneg %p108
        $region22: #{tpu_custom_call.1} parent=11 // pred_check_branch
          %230 = sbr.rel (%p228) target = $region24
        $region23: #{tpu_custom_call.1} parent=11 // pred_region
          %s232 = ssub.s32 256, 256
          %233 = vsyncadd [#allocation6], %s232
          %s234 = sshll.u32 [#allocation7], 4
          %s235 = int_to_ptr.vmem [resolvable:$true] %s234
          %240 = dma.hbm_to_vmem [thread:$0]  %s3, 256, %s235, [#allocation6], 64, 64, 4
        $region24: #{tpu_custom_call.1} parent=11 // pred_fallthru
          _
        // Predicated region
        $region25: #{tpu_custom_call.1} parent=11 // pred_check
          %p241 = pneg %p129
        $region26: #{tpu_custom_call.1} parent=11 // pred_check_branch
          %243 = sbr.rel (%p241) target = $region28
        $region27: #{tpu_custom_call.1} parent=11 // pred_region
          _
        $region28: #{tpu_custom_call.1} parent=11 // pred_fallthru
          _
        // Predicated region
        $region29: #{tpu_custom_call.1} parent=11 // pred_check
          %p244 = pneg %p150
        $region30: #{tpu_custom_call.1} parent=11 // pred_check_branch
          %246 = sbr.rel (%p244) target = $region32
        $region31: #{tpu_custom_call.1} parent=11 // pred_region
          _
        $region32: #{tpu_custom_call.1} parent=11 // pred_fallthru
          _
        // Predicated region
        $region33: #{tpu_custom_call.1} parent=11 // pred_check
          %p247 = pneg %p171
        $region34: #{tpu_custom_call.1} parent=11 // pred_check_branch
          %249 = sbr.rel (%p247) target = $region36
        $region35: #{tpu_custom_call.1} parent=11 // pred_region
          _
        $region36: #{tpu_custom_call.1} parent=11 // pred_fallthru
          _
      $region12: #{tpu_custom_call.1} parent=5 // pred_fallthru
        _
      %p250 = scmp.lt.s32.totalorder %s19, 2
      // Predicated region
      $region37: #{tpu_custom_call.1} parent=5 // pred_check
        %p251 = pneg %p250
      $region38: #{tpu_custom_call.1} parent=5 // pred_check_branch
        %253 = sbr.rel (%p251) target = $region40
      $region39: #{tpu_custom_call.1} parent=5 // pred_region
        // Predicated region
        $region41: #{tpu_custom_call.1} parent=39 // pred_check
          %p254 = pneg %p39
        $region42: #{tpu_custom_call.1} parent=39 // pred_check_branch
          %256 = sbr.rel (%p254) target = $region44
        $region43: #{tpu_custom_call.1} parent=39 // pred_region
          %s257 = sand.u32 %s29, 1
          %s258 = scalar_lea.sflag [#allocation4], %s257
          %s259 = sand.u32 %s29, 1
          %s260 = smul.addr %s259, 8
          %s261 = scalar_lea.vmem [#allocation3], %s260
          %s263 = ssub.s32 128, 128
          %264 = vsyncadd %s258, %s263
          %s265 = smul.addr %s19, 128
          %s266 = scalar_lea.hbm %s0, %s265
          %s268 = sshll.u32 %s261, 4
          %s269 = int_to_ptr.vmem [resolvable:$true] %s268
          %271 = dma.hbm_to_vmem [thread:$0]  %s266, 128, %s269, %s258
        $region44: #{tpu_custom_call.1} parent=39 // pred_fallthru
          _
      $region40: #{tpu_custom_call.1} parent=5 // pred_fallthru
        _
      %p272 = scmp.le.s32.totalorder 1, %s19
      %p273 = scmp.lt.s32.totalorder %s19, 3
      %p274 = pnand %p272, %p273
      %p275 = pneg %p274
      // Predicated region
      $region45: #{tpu_custom_call.1} parent=5 // pred_check
        _
      $region46: #{tpu_custom_call.1} parent=5 // pred_check_branch
        %277 = sbr.rel (%p274) target = $region48
      $region47: #{tpu_custom_call.1} parent=5 // pred_region
        %s278 = ssub.s32 %s19, 1
        %s279 = sand.u32 %s32, 1
        %s280 = scalar_lea.sflag [#allocation4], %s279
        %s281 = sand.u32 %s32, 1
        %s282 = smul.addr %s281, 8
        %s283 = scalar_lea.vmem [#allocation3], %s282
        // Predicated region
        $region49: #{tpu_custom_call.1} parent=47 // pred_check
          %p284 = pneg %p45
        $region50: #{tpu_custom_call.1} parent=47 // pred_check_branch
          %286 = sbr.rel (%p284) target = $region52
        $region51: #{tpu_custom_call.1} parent=47 // pred_region
          %287 = dma.done %s280, 128
        $region52: #{tpu_custom_call.1} parent=47 // pred_fallthru
          _
        // Predicated region
        $region53: #{tpu_custom_call.1} parent=47 // pred_check
          %p288 = pneg %p66
        $region54: #{tpu_custom_call.1} parent=47 // pred_check_branch
          %290 = sbr.rel (%p288) target = $region56
        $region55: #{tpu_custom_call.1} parent=47 // pred_region
          %291 = dma.done [#allocation6], 256
        $region56: #{tpu_custom_call.1} parent=47 // pred_fallthru
          _
        // Predicated region
        $region57: #{tpu_custom_call.1} parent=47 // pred_check
          %p292 = pneg %p108
        $region58: #{tpu_custom_call.1} parent=47 // pred_check_branch
          %294 = sbr.rel (%p292) target = $region60
        $region59: #{tpu_custom_call.1} parent=47 // pred_region
          %295 = dma.done [#allocation6], 256
        $region60: #{tpu_custom_call.1} parent=47 // pred_fallthru
          _
        %s296 = sand.u32 %s32, 1
        %s297 = scalar_lea.sflag [#allocation4], %s296
        %s298 = sand.u32 %s32, 1
        %s299 = smul.addr %s298, 8
        %s300 = scalar_lea.vmem [#allocation3], %s299
        %p301 = pneg %p45
        %p302 = pneg %p42
        %p303 = pneg %p66
        %p304 = pneg %p63
        %p305 = pneg %p87
        %p306 = pneg %p84
        %p307 = pneg %p108
        %p308 = pneg %p105
        %p309 = pneg %p129
        %p310 = pneg %p126
        %p311 = pneg %p150
        %p312 = pneg %p147
        %p313 = pneg %p171
        %p314 = pneg %p168
        %p315 = pneg %p197
        %p316 = pneg %p194
        %p317 = scmp.lt.s32.totalorder %s24, 1
        %s318 = scalar_select %p317, %s24, 1
        %s319 = smul.addr %s318, 8
        %s320 = scalar_lea.vmem %s7, %s319
        %p321 = scmp.lt.s32.totalorder %s24, 1
        %s322 = scalar_select %p321, %s24, 1
        %s323 = smul.addr %s322, 8
        %s324 = scalar_lea.vmem %s7, %s323
        %v326 = vld [vmem:[%s283] sm:$0xff]
        %v327 = vpack.c.bf16 %v326, %v326
        %v328 = vld [vmem:[#allocation5] sm:$0xf]
        %v329 = vld [vmem:[#allocation5 + $0x4] sm:$0xf]
        %v330 = vld [vmem:[#allocation5 + $0x8] sm:$0xf]
        %v331 = vld [vmem:[#allocation5 + $0xc] sm:$0xf]
        %v332 = vld [vmem:[%s2] sm:$0x1]
        %v334 = vlaneseq
        %v335 = vshrl.u32 %v334, 7
        %v336 = vsub.s32 0, %v335
        %v337 = vrot.slane %v332, %v336
        %v343 = vunpack.c.l.b16 %v328
        %v344 = vunpack.c.l.b16 %v329
        %v345 = vunpack.c.l.b16 %v330
        %v346 = vunpack.c.l.b16 %v331
        %v347 = vpack.c.b16 %v344, %v343
        %v348 = vpack.c.b16 %v346, %v345
        %vm351 = vcmask 261120
        %v353 = vsel %vm351, %v327, 0
        %355 = vmatprep.subr.bf16.mxu0 0
        %356 = vmatpush1.bf16.msra.mxu0 %v347
        %357 = vmatprep.subr.bf16.mxu0 0
        %358 = vmatpush1.bf16.msra.mxu0 %v348
        %359 = vmatprep.subr.bf16.mxu0 0
        %360 = vmatpush1.bf16.msra.mxu0 0
        %361 = vmatprep.subr.bf16.mxu0 0
        %362 = vmatpush1.bf16.msra.mxu0 0
        %363 = vmatprep.subr.bf16.mxu0 0
        %364 = vmatpush1.bf16.msra.mxu0 0
        %365 = vmatprep.subr.bf16.mxu0 0
        %366 = vmatpush1.bf16.msra.mxu0 0
        %367 = vmatprep.subr.bf16.mxu0 0
        %368 = vmatpush1.bf16.msra.mxu0 0
        %369 = vmatprep.subr.bf16.mxu0 0
        %370 = vmatpush1.bf16.msra.mxu0 0
        %371 = vmatprep.subr.bf16.mxu0 0
        %372 = vmatpush1.bf16.msra.mxu0 0
        %373 = vmatprep.subr.bf16.mxu0 0
        %374 = vmatpush1.bf16.msra.mxu0 0
        %375 = vmatprep.subr.bf16.mxu0 0
        %376 = vmatpush1.bf16.msra.mxu0 0
        %377 = vmatprep.subr.bf16.mxu0 0
        %378 = vmatpush1.bf16.msra.mxu0 0
        %379 = vmatprep.subr.bf16.mxu0 0
        %380 = vmatpush1.bf16.msra.mxu0 0
        %381 = vmatprep.subr.bf16.mxu0 0
        %382 = vmatpush1.bf16.msra.mxu0 0
        %383 = vmatprep.subr.bf16.mxu0 0
        %384 = vmatpush1.bf16.msra.mxu0 0
        %385 = vmatprep.subr.bf16.mxu0 0
        %386 = vmatpush1.bf16.msra.mxu0 0
        %387 = vmatprep.mubr.bf16.mxu0 0
        %388 = vmatmul.mubr.bf16.gmra.mrb[0].mxu0 %v353
        %v389 = vpop.f32.mrb[0].mxu0
        %v390 = vadd.f32 %v337, %v389
        %v391 = vpop.f32.mrb[0].mxu0
        %v392 = vpop.f32.mrb[0].mxu0
        %v393 = vpop.f32.mrb[0].mxu0
        %394 = vdwg.mxu0
        %v395 = vmax.f32 %v390, 0.0
        %v396 = vpack.c.bf16 %v395, %v395
        %v397 = vld [vmem:[#allocation7] sm:$0xf]
        %v398 = vld [vmem:[#allocation7 + $0x4] sm:$0xf]
        %v399 = vld [vmem:[#allocation7 + $0x8] sm:$0xf]
        %v400 = vld [vmem:[#allocation7 + $0xc] sm:$0xf]
        %v401 = vld [vmem:[%s4] sm:$0x1]
        %v403 = vlaneseq
        %v404 = vshrl.u32 %v403, 7
        %v405 = vsub.s32 0, %v404
        %v406 = vrot.slane %v401, %v405
        %v412 = vunpack.c.l.b16 %v397
        %v413 = vunpack.c.l.b16 %v398
        %v414 = vunpack.c.l.b16 %v399
        %v415 = vunpack.c.l.b16 %v400
        %v416 = vpack.c.b16 %v413, %v412
        %v417 = vpack.c.b16 %v415, %v414
        %v421 = vsel %vm351, %v396, 0
        %423 = vmatprep.subr.bf16.mxu0 0
        %424 = vmatpush1.bf16.msra.mxu0 %v416
        %425 = vmatprep.subr.bf16.mxu0 0
        %426 = vmatpush1.bf16.msra.mxu0 %v417
        %427 = vmatprep.subr.bf16.mxu0 0
        %428 = vmatpush1.bf16.msra.mxu0 0
        %429 = vmatprep.subr.bf16.mxu0 0
        %430 = vmatpush1.bf16.msra.mxu0 0
        %431 = vmatprep.subr.bf16.mxu0 0
        %432 = vmatpush1.bf16.msra.mxu0 0
        %433 = vmatprep.subr.bf16.mxu0 0
        %434 = vmatpush1.bf16.msra.mxu0 0
        %435 = vmatprep.subr.bf16.mxu0 0
        %436 = vmatpush1.bf16.msra.mxu0 0
        %437 = vmatprep.subr.bf16.mxu0 0
        %438 = vmatpush1.bf16.msra.mxu0 0
        %439 = vmatprep.subr.bf16.mxu0 0
        %440 = vmatpush1.bf16.msra.mxu0 0
        %441 = vmatprep.subr.bf16.mxu0 0
        %442 = vmatpush1.bf16.msra.mxu0 0
        %443 = vmatprep.subr.bf16.mxu0 0
        %444 = vmatpush1.bf16.msra.mxu0 0
        %445 = vmatprep.subr.bf16.mxu0 0
        %446 = vmatpush1.bf16.msra.mxu0 0
        %447 = vmatprep.subr.bf16.mxu0 0
        %448 = vmatpush1.bf16.msra.mxu0 0
        %449 = vmatprep.subr.bf16.mxu0 0
        %450 = vmatpush1.bf16.msra.mxu0 0
        %451 = vmatprep.subr.bf16.mxu0 0
        %452 = vmatpush1.bf16.msra.mxu0 0
        %453 = vmatprep.subr.bf16.mxu0 0
        %454 = vmatpush1.bf16.msra.mxu0 0
        %455 = vmatprep.mubr.bf16.mxu0 0
        %456 = vmatmul.mubr.bf16.gmra.mrb[0].mxu0 %v421
        %v457 = vpop.f32.mrb[0].mxu0
        %v458 = vadd.f32 %v406, %v457
        %v459 = vpop.f32.mrb[0].mxu0
        %v460 = vpop.f32.mrb[0].mxu0
        %v461 = vpop.f32.mrb[0].mxu0
        %462 = vdwg.mxu0
        %v463 = vmax.f32 %v458, 0.0
        %v464 = vpack.c.bf16 %v463, %v463
        %v465 = vld [vmem:[%s5] sm:$0x1]
        %v466 = vld [vmem:[#allocation2] sm:$0x1]
        %v467 = vunpack.c.l.bf16 %v464
        %v469 = vlaneseq
        %v470 = vshrl.u32 %v469, 7
        %v471 = vsub.s32 0, %v470
        %v472 = vrot.slane %v465, %v471
        %v474 = vmul.f32 %v467, %v472
        %v475 = vsel %vm351, %v474, 0.0
        %476 = vadd.xlane.f32.xlu0 %v475
        %v477 = vpop.xlane.xlu0 %476
        %v479 = vlaneseq
        %v480 = vshrl.u32 %v479, 7
        %v481 = vsub.s32 0, %v480
        %v482 = vrot.slane %v466, %v481
        %v484 = vadd.f32 %v477, %v482
        %vm485 = vcmask 7168
        %486 = vst.msk [vmem:[%s324] sm:$0xff] %vm485, %v484
        %p487 = scmp.lt.s32.totalorder %s24, 1
        %s488 = scalar_select %p487, %s24, 1
        %s489 = smul.addr %s488, 8
        %s490 = scalar_lea.vmem %s7, %s489
        // Predicated region
        $region61: #{tpu_custom_call.1} parent=47 // pred_check
          %p491 = pneg %p194
        $region62: #{tpu_custom_call.1} parent=47 // pred_check_branch
          %493 = sbr.rel (%p491) target = $region64
        $region63: #{tpu_custom_call.1} parent=47 // pred_region
          _
        $region64: #{tpu_custom_call.1} parent=47 // pred_fallthru
          _
      $region48: #{tpu_custom_call.1} parent=5 // pred_fallthru
        _
      %p494 = scmp.le.s32.totalorder 2, %s19
      // Predicated region
      $region65: #{tpu_custom_call.1} parent=5 // pred_check
        %p495 = pneg %p494
      $region66: #{tpu_custom_call.1} parent=5 // pred_check_branch
        %497 = sbr.rel (%p495) target = $region68
      $region67: #{tpu_custom_call.1} parent=5 // pred_region
        %s498 = ssub.s32 %s19, 2
        // Predicated region
        $region69: #{tpu_custom_call.1} parent=67 // pred_check
          %p499 = pneg %p200
        $region70: #{tpu_custom_call.1} parent=67 // pred_check_branch
          %501 = sbr.rel (%p499) target = $region72
        $region71: #{tpu_custom_call.1} parent=67 // pred_region
          %p502 = scmp.lt.s32.totalorder %s25, 1
          %s503 = scalar_select %p502, %s25, 1
          %s504 = smul.addr %s503, 8
          %s505 = scalar_lea.vmem %s7, %s504
        $region72: #{tpu_custom_call.1} parent=67 // pred_fallthru
          _
      $region68: #{tpu_custom_call.1} parent=5 // pred_fallthru
        _
    $region6: #{tpu_custom_call.1} parent=1 // loop_footer
      %s23 = sadd.s32 1, %s19
    $region7: #{tpu_custom_call.1} parent=1 // loop_footer_branch
      %18 = sbr.rel target = $region3
    $region8: #{tpu_custom_call.1} parent=1 // loop_exit
      _
    %506 = vsyncpa [#allocation4], 1
    %s507 = scalar_lea.sflag [#allocation4], 1
    %508 = vsyncpa %s507, 1
    %509 = vsyncpa [#allocation6], 1

</llo_original>
